<compile_context>
chip_gen: v7x
topology: tpu7x:2x2x1
jax: 0.10.0
libtpu: 0.0.40
codegen_flags: <defaults>
</compile_context>

<pallas_src>
import jax
import jax.numpy as jnp
from jax import lax
from jax.experimental import pallas as pl
from jax.experimental.pallas import tpu as pltpu

LANES = 128            # batch elements per dense output row (lane dim)
ROW_W = 2 * LANES      # 256 interleaved x-values per row: [x0,x1,x0,x1,...]
TR_MAX = 8192          # rows per grid step (~1M batch elems):
                       #   x tile 8192*256*4B = 8 MiB, y tile 8192*128*4B = 4 MiB
                       #   -> ~24 MiB double-buffered, fits every generation.
VMEM_LIMIT = 48 * 1024 * 1024


def linreg_kernel(b_ref, w_ref, x_ref, o_ref):
    # x_ref: (tr, 256) f32 -- 128 batch elements per row, lanes interleaved.
    # w_ref: (256, 128) f32 resident deinterleave+contract matrix.
    # One MXU matmul does deinterleave + weighted sum + compaction; bias add is
    # a VPU broadcast from an SMEM scalar.  All loads/stores are vreg-dense.
    o_ref[...] = (
        jnp.dot(x_ref[...], w_ref[...], preferred_element_type=jnp.float32)
        + b_ref[0]
    )


def linear_regression_forward(x, w, b):
    """y = x @ w + b for x:(N,2), w:(2,1), b:(1,) -> (N,1) float32."""
    n, k = x.shape
    assert k == 2 and w.shape == (2, 1) and b.shape == (1,)
    x = x.astype(jnp.float32)

    # Zero-copy layout: contiguous (N,2) == (N/128, 256) interleaved rows.
    # Only ragged batches pay a pad, and only to a 1024-element quantum.
    quantum = 8 * LANES
    if n % quantum:
        x = jnp.pad(x, ((0, quantum - n % quantum), (0, 0)))
    n_rows = x.shape[0] // LANES
    xr = x.reshape(n_rows, ROW_W)            # free reshape, no HBM pass

    # Rows per grid step: capped at half the work (rounded to 8 sublanes) so the
    # grid has >=2 steps when possible -> both v7x TensorCores stream.
    tr = min(TR_MAX, max(8, (-(-n_rows // 2) + 7) // 8 * 8))
    grid = (-(-n_rows // tr),)               # cdiv; last block may be partial

    # Deinterleave + contract matrix: W[2j,j]=w0, W[2j+1,j]=w1, else 0.
    ki = lax.broadcasted_iota(jnp.int32, (ROW_W, LANES), 0)
    ji = lax.broadcasted_iota(jnp.int32, (ROW_W, LANES), 1)
    w_big = jnp.where(ki == 2 * ji, w[0, 0],
                      jnp.where(ki == 2 * ji + 1, w[1, 0], 0.0)
                      ).astype(jnp.float32)                     # (256,128), 128 KiB

    bias = b.astype(jnp.float32).reshape(1)                     # scalar -> SMEM

    out = pl.pallas_call(
        linreg_kernel,
        out_shape=jax.ShapeDtypeStruct((n_rows, LANES), jnp.float32),
        grid=grid,
        in_specs=[
            pl.BlockSpec(memory_space=pltpu.MemorySpace.SMEM),  # bias scalar
            pl.BlockSpec((ROW_W, LANES), lambda i: (0, 0)),     # W_big, resident
            pl.BlockSpec((tr, ROW_W), lambda i: (i, 0)),        # dense x tile
        ],
        out_specs=pl.BlockSpec((tr, LANES), lambda i: (i, 0)),  # dense y tile
        compiler_params=pltpu.CompilerParams(
            dimension_semantics=("parallel",),   # shard tiles across TCs (v7x)
            vmem_limit_bytes=VMEM_LIMIT,         # ~24 MiB live + headroom
        ),
        cost_estimate=pl.CostEstimate(
            flops=2 * n_rows * ROW_W * LANES + n_rows * LANES,
            transcendentals=0,
            bytes_accessed=4 * (n_rows * ROW_W + n_rows * LANES + ROW_W * LANES),
        ),
    )(bias, w_big, xr)

    y = out.reshape(n_rows * LANES, 1)       # free reshape back to batch order
    return y if n == n_rows * LANES else y[:n]


if __name__ == "__main__":
    key = jax.random.PRNGKey(0)
    kx, kw = jax.random.split(key)

    # Module params: w ~ N(0,1) of shape (2,1), b = zeros(1). Deterministic init.
    w = jax.random.normal(kw, (2, 1), dtype=jnp.float32)
    b = jnp.zeros((1,), dtype=jnp.float32)

    # forward implies X of shape (batch, 2); use batch=8.
    x = jax.random.normal(kx, (8, 2), dtype=jnp.float32)

    out = linear_regression_forward(x, w, b)
    out = jax.block_until_ready(out)

    # Correctness check against plain JAX reference.
    ref = x @ w + b
    assert out.shape == (8, 1)
    assert jnp.allclose(out, ref, atol=1e-4, rtol=1e-4), "mismatch vs reference"

    print("KERNEL_OK")
</pallas_src>

<mosaic_0001>
module attributes {stable_mosaic.version = 11 : i64} {
  func.func @linreg_kernel(%arg0: i32, %arg1: memref<1xf32, #tpu.memory_space<smem>>, %arg2: memref<256x128xf32, #tpu.memory_space<vmem>>, %arg3: memref<8x256xf32, #tpu.memory_space<vmem>>, %arg4: memref<8x128xf32, #tpu.memory_space<vmem>>) attributes {dimension_semantics = [#tpu.dimension_semantics<parallel>], iteration_bounds = array<i64: 1>, scalar_prefetch = 0 : i64, scratch_operands = 0 : i64, tpu.core_type = #tpu.core_type<tc>, window_params = [{transform_indices = @transform_0, window_bounds = array<i64: 1>}, {pipeline_mode = #tpu.pipeline_mode<synchronous>, transform_indices = @transform_1, window_bounds = array<i64: 256, 128>}, {transform_indices = @transform_2, window_bounds = array<i64: 8, 256>}, {transform_indices = @transform_3, window_bounds = array<i64: 8, 128>}]} {
    %c0 = arith.constant 0 : index
    %c0_0 = arith.constant 0 : index
    %0 = vector.load %arg3[%c0, %c0_0] : memref<8x256xf32, #tpu.memory_space<vmem>>, vector<8x256xf32>
    %c0_1 = arith.constant 0 : index
    %c0_2 = arith.constant 0 : index
    %1 = vector.load %arg2[%c0_1, %c0_2] : memref<256x128xf32, #tpu.memory_space<vmem>>, vector<256x128xf32>
    %cst = arith.constant dense<0.000000e+00> : vector<8x128xf32>
    %2 = tpu.matmul %0, %1, %cst {dimension_numbers = #tpu.dot_dimension_numbers<[1], [0], [0], [1], [0, 0, 1, 1], [], []>} : vector<8x256xf32>, vector<256x128xf32>, vector<8x128xf32> -> vector<8x128xf32>
    %c0_3 = arith.constant 0 : index
    %3 = memref.load %arg1[%c0_3] : memref<1xf32, #tpu.memory_space<smem>>
    %4 = vector.broadcast %3 : f32 to vector<8x128xf32>
    %5 = arith.addf %2, %4 : vector<8x128xf32>
    %c0_4 = arith.constant 0 : index
    %c0_5 = arith.constant 0 : index
    %6 = vector.load %arg4[%c0_4, %c0_5] : memref<8x128xf32, #tpu.memory_space<vmem>>, vector<8x128xf32>
    tpu.vector_store %arg4[%c0_4, %c0_5], %5 {strides = array<i32>} : memref<8x128xf32, #tpu.memory_space<vmem>>, vector<8x128xf32>,
    return
  }
  func.func @transform_0(%arg0: i32) -> i32 {
    %c0_i32 = arith.constant 0 : i32
    %c0_i32_0 = arith.constant 0 : i32
    return %c0_i32 : i32
  }
  func.func @transform_1(%arg0: i32) -> (i32, i32) {
    %c0_i32 = arith.constant 0 : i32
    %c0_i32_0 = arith.constant 0 : i32
    %c0_i32_1 = arith.constant 0 : i32
    return %c0_i32, %c0_i32_0 : i32, i32
  }
  func.func @transform_2(%arg0: i32) -> (i32, i32) {
    %c0_i32 = arith.constant 0 : i32
    %c0_i32_0 = arith.constant 0 : i32
    return %arg0, %c0_i32 : i32, i32
  }
  func.func @transform_3(%arg0: i32) -> (i32, i32) {
    %c0_i32 = arith.constant 0 : i32
    %c0_i32_0 = arith.constant 0 : i32
    return %arg0, %c0_i32 : i32, i32
  }
}

</mosaic_0001>

<llo_original>
// kernel: tpu_custom_call.1
$region0: #{tpu_custom_call.1}
  #allocation0 [shape = 'u32[]', space=smem, size = 0x4, offset = 0x4, fixed_abs, tag = 'smem constant byte address 0x4 - core index']
  #allocation1 [shape = 'u32[144,128]{1,0:T(1,128)}', space=vmem, size = 0x12000, scoped, tag = 'internal scratch']
  #allocation2 [shape = 'f32[1]{0:T(128)S(6)}', space=smem, size = 0x200, scoped, tag = 'scoped memory for tpu_custom_call.1']
  %s0 = inlined_call_operand.<no memory space> [shape: f32[1], index: 0, kind: input, shape index: {}]
  %s1 = inlined_call_operand.hbm [shape: f32[256,128], index: 1, kind: input, shape index: {}]
  %s2 = inlined_call_operand.hbm [shape: f32[8,256], index: 2, kind: input, shape index: {}]
  %s3 = inlined_call_operand.hbm [shape: f32[8,128], index: 3, kind: output, shape index: {}]
  %s4 = sld [smem:[#allocation0]]
  $region30: #{tpu_custom_call.1} parent=0
    _
  %s6 = ssub.s32 1, %s4
  %s7 = scalar_select 0, %s6, %s4
  %8 = sst [smem:[#allocation2]] %s0
  $region1: #{tpu_custom_call.1} parent=0
    #allocation3 [shape = 'u8[131072]{0}', space=vmem, size = 0x20000, scoped, tag = 'input window, operand 1, single buffered']
    #allocation4 [shape = 's32[1]{0}', space=sflag, size = 0x4, scoped, tag = 'scoped memory for tpu_custom_call.1']
    #allocation5 [shape = 's32[1]{0}', space=sflag, size = 0x4, scoped, tag = 'scoped memory for tpu_custom_call.1']
    #allocation6 [shape = 'u8[8192]{0}', space=vmem, size = 0x2000, scoped, tag = 'input window, operand 2, single buffered']
    #allocation7 [shape = 's32[1]{0}', space=sflag, size = 0x4, scoped, tag = 'scoped memory for tpu_custom_call.1']
    #allocation8 [shape = 'u8[4096]{0}', space=vmem, size = 0x1000, scoped, tag = 'output window, operand 0, single buffered']
    %9 = vsyncpa [#allocation4], 0
    %10 = vsyncpa [#allocation7], 0
    %11 = vsyncpa [#allocation5], 0
    // Predicated region
    $region2: #{tpu_custom_call.1} parent=1 // pred_check
      _
    $region3: #{tpu_custom_call.1} parent=1 // pred_check_branch
      %13 = sbr.rel (0) target = $region5
    $region4: #{tpu_custom_call.1} parent=1 // pred_region
      _
    $region5: #{tpu_custom_call.1} parent=1 // pred_fallthru
      _
    // Predicated region
    $region6: #{tpu_custom_call.1} parent=1 // pred_check
      _
    $region7: #{tpu_custom_call.1} parent=1 // pred_check_branch
      %15 = sbr.rel (0) target = $region9
    $region8: #{tpu_custom_call.1} parent=1 // pred_region
      %s17 = ssub.s32 4096, 4096
      %18 = vsyncadd [#allocation4], %s17
      %s19 = sshll.u32 [#allocation3], 4
      %s20 = int_to_ptr.vmem [resolvable:$true] %s19
      %25 = dma.hbm_to_vmem [thread:$0]  %s1, 4096, %s20, [#allocation4], 128, 128, 8
    $region9: #{tpu_custom_call.1} parent=1 // pred_fallthru
      _
    // Predicated region
    $region10: #{tpu_custom_call.1} parent=1 // pred_check
      _
    $region11: #{tpu_custom_call.1} parent=1 // pred_check_branch
      %27 = sbr.rel (0) target = $region13
    $region12: #{tpu_custom_call.1} parent=1 // pred_region
      %s29 = ssub.s32 256, 256
      %30 = vsyncadd [#allocation7], %s29
      %s32 = sshll.u32 [#allocation6], 4
      %s33 = int_to_ptr.vmem [resolvable:$true] %s32
      %35 = dma.hbm_to_vmem [thread:$0]  %s2, 256, %s33, [#allocation7]
    $region13: #{tpu_custom_call.1} parent=1 // pred_fallthru
      _
    // Predicated region
    $region14: #{tpu_custom_call.1} parent=1 // pred_check
      _
    $region15: #{tpu_custom_call.1} parent=1 // pred_check_branch
      %37 = sbr.rel (0) target = $region17
    $region16: #{tpu_custom_call.1} parent=1 // pred_region
      %38 = dma.done [#allocation4], 4096
    $region17: #{tpu_custom_call.1} parent=1 // pred_fallthru
      _
    // Predicated region
    $region18: #{tpu_custom_call.1} parent=1 // pred_check
      _
    $region19: #{tpu_custom_call.1} parent=1 // pred_check_branch
      %40 = sbr.rel (0) target = $region21
    $region20: #{tpu_custom_call.1} parent=1 // pred_region
      %41 = dma.done [#allocation7], 256
    $region21: #{tpu_custom_call.1} parent=1 // pred_fallthru
      _
    %v42 = vld [vmem:[#allocation6] sm:$0xff]
    %v43 = vld [vmem:[#allocation6 + $0x8] sm:$0xff]
    %v44 = vld [vmem:[#allocation3] sm:$0xff]
    %v45 = vld [vmem:[#allocation3 + $0x8] sm:$0xff]
    %v46 = vld [vmem:[#allocation3 + $0x10] sm:$0xff]
    %v47 = vld [vmem:[#allocation3 + $0x18] sm:$0xff]
    %v48 = vld [vmem:[#allocation3 + $0x20] sm:$0xff]
    %v49 = vld [vmem:[#allocation3 + $0x28] sm:$0xff]
    %v50 = vld [vmem:[#allocation3 + $0x30] sm:$0xff]
    %v51 = vld [vmem:[#allocation3 + $0x38] sm:$0xff]
    %v52 = vld [vmem:[#allocation3 + $0x40] sm:$0xff]
    %v53 = vld [vmem:[#allocation3 + $0x48] sm:$0xff]
    %v54 = vld [vmem:[#allocation3 + $0x50] sm:$0xff]
    %v55 = vld [vmem:[#allocation3 + $0x58] sm:$0xff]
    %v56 = vld [vmem:[#allocation3 + $0x60] sm:$0xff]
    %v57 = vld [vmem:[#allocation3 + $0x68] sm:$0xff]
    %v58 = vld [vmem:[#allocation3 + $0x70] sm:$0xff]
    %v59 = vld [vmem:[#allocation3 + $0x78] sm:$0xff]
    %v60 = vld [vmem:[#allocation3 + $0x80] sm:$0xff]
    %v61 = vld [vmem:[#allocation3 + $0x88] sm:$0xff]
    %v62 = vld [vmem:[#allocation3 + $0x90] sm:$0xff]
    %v63 = vld [vmem:[#allocation3 + $0x98] sm:$0xff]
    %v64 = vld [vmem:[#allocation3 + $0xa0] sm:$0xff]
    %v65 = vld [vmem:[#allocation3 + $0xa8] sm:$0xff]
    %v66 = vld [vmem:[#allocation3 + $0xb0] sm:$0xff]
    %v67 = vld [vmem:[#allocation3 + $0xb8] sm:$0xff]
    %v68 = vld [vmem:[#allocation3 + $0xc0] sm:$0xff]
    %v69 = vld [vmem:[#allocation3 + $0xc8] sm:$0xff]
    %v70 = vld [vmem:[#allocation3 + $0xd0] sm:$0xff]
    %v71 = vld [vmem:[#allocation3 + $0xd8] sm:$0xff]
    %v72 = vld [vmem:[#allocation3 + $0xe0] sm:$0xff]
    %v73 = vld [vmem:[#allocation3 + $0xe8] sm:$0xff]
    %v74 = vld [vmem:[#allocation3 + $0xf0] sm:$0xff]
    %v75 = vld [vmem:[#allocation3 + $0xf8] sm:$0xff]
    %s76 = sld [smem:[#allocation2]]
    %v77 = vstv %s76
    %78 = vmatprep.subr.mxu0 0.0
    %79 = vmatpush1.msra.mxu0 %v44
    %80 = vmatprep.subr.mxu0 0.0
    %81 = vmatpush1.msra.mxu0 %v45
    %82 = vmatprep.subr.mxu0 0.0
    %83 = vmatpush1.msra.mxu0 %v46
    %84 = vmatprep.subr.mxu0 0.0
    %85 = vmatpush1.msra.mxu0 %v47
    %86 = vmatprep.subr.mxu0 0.0
    %87 = vmatpush1.msra.mxu0 %v48
    %88 = vmatprep.subr.mxu0 0.0
    %89 = vmatpush1.msra.mxu0 %v49
    %90 = vmatprep.subr.mxu0 0.0
    %91 = vmatpush1.msra.mxu0 %v50
    %92 = vmatprep.subr.mxu0 0.0
    %93 = vmatpush1.msra.mxu0 %v51
    %94 = vmatprep.subr.mxu0 0.0
    %95 = vmatpush1.msra.mxu0 %v52
    %96 = vmatprep.subr.mxu0 0.0
    %97 = vmatpush1.msra.mxu0 %v53
    %98 = vmatprep.subr.mxu0 0.0
    %99 = vmatpush1.msra.mxu0 %v54
    %100 = vmatprep.subr.mxu0 0.0
    %101 = vmatpush1.msra.mxu0 %v55
    %102 = vmatprep.subr.mxu0 0.0
    %103 = vmatpush1.msra.mxu0 %v56
    %104 = vmatprep.subr.mxu0 0.0
    %105 = vmatpush1.msra.mxu0 %v57
    %106 = vmatprep.subr.mxu0 0.0
    %107 = vmatpush1.msra.mxu0 %v58
    %108 = vmatprep.subr.mxu0 0.0
    %109 = vmatpush1.msra.mxu0 %v59
    %110 = vmatprep.subr.mxu0 0.0
    %111 = vmatpush1.msra.mxu0 %v60
    %112 = vmatprep.subr.mxu0 0.0
    %113 = vmatpush1.msra.mxu0 %v61
    %114 = vmatprep.subr.mxu0 0.0
    %115 = vmatpush1.msra.mxu0 %v62
    %116 = vmatprep.subr.mxu0 0.0
    %117 = vmatpush1.msra.mxu0 %v63
    %118 = vmatprep.subr.mxu0 0.0
    %119 = vmatpush1.msra.mxu0 %v64
    %120 = vmatprep.subr.mxu0 0.0
    %121 = vmatpush1.msra.mxu0 %v65
    %122 = vmatprep.subr.mxu0 0.0
    %123 = vmatpush1.msra.mxu0 %v66
    %124 = vmatprep.subr.mxu0 0.0
    %125 = vmatpush1.msra.mxu0 %v67
    %126 = vmatprep.subr.mxu0 0.0
    %127 = vmatpush1.msra.mxu0 %v68
    %128 = vmatprep.subr.mxu0 0.0
    %129 = vmatpush1.msra.mxu0 %v69
    %130 = vmatprep.subr.mxu0 0.0
    %131 = vmatpush1.msra.mxu0 %v70
    %132 = vmatprep.subr.mxu0 0.0
    %133 = vmatpush1.msra.mxu0 %v71
    %134 = vmatprep.subr.mxu0 0.0
    %135 = vmatpush1.msra.mxu0 %v72
    %136 = vmatprep.subr.mxu0 0.0
    %137 = vmatpush1.msra.mxu0 %v73
    %138 = vmatprep.subr.mxu0 0.0
    %139 = vmatpush1.msra.mxu0 %v74
    %140 = vmatprep.subr.mxu0 0.0
    %141 = vmatpush1.msra.mxu0 %v75
    %142 = vmatprep.mubr.f32.mxu0 %v43
    %143 = vmatmul.mubr.f32.gmra.mrb[0].mxu0 %v42
    %v144 = vpop.f32.mrb[0].mxu0
    %v145 = vadd.f32 %v77, %v144
    %v146 = vpop.f32.mrb[0].mxu0
    %147 = vdwg.mxu0
    %148 = vst [vmem:[#allocation8] sm:$0xff] %v145
    // Predicated region
    $region22: #{tpu_custom_call.1} parent=1 // pred_check
      _
    $region23: #{tpu_custom_call.1} parent=1 // pred_check_branch
      %150 = sbr.rel (0) target = $region25
    $region24: #{tpu_custom_call.1} parent=1 // pred_region
      %s152 = ssub.s32 128, 128
      %153 = vsyncadd [#allocation5], %s152
      %s155 = sshll.u32 [#allocation8], 4
      %s156 = int_to_ptr.vmem [resolvable:$true] %s155
      %158 = dma.vmem_to_hbm [thread:$0]  %s156, 128, %s3, [#allocation5]
    $region25: #{tpu_custom_call.1} parent=1 // pred_fallthru
      _
    // Predicated region
    $region26: #{tpu_custom_call.1} parent=1 // pred_check
      _
    $region27: #{tpu_custom_call.1} parent=1 // pred_check_branch
      %160 = sbr.rel (0) target = $region29
    $region28: #{tpu_custom_call.1} parent=1 // pred_region
      %161 = dma.done [#allocation5], 128
    $region29: #{tpu_custom_call.1} parent=1 // pred_fallthru
      _
    %162 = vsyncpa [#allocation4], 1
    %163 = vsyncpa [#allocation7], 1
    %164 = vsyncpa [#allocation5], 1

</llo_original>
